<compile_context>
chip_gen: v7x
topology: tpu7x:2x2x1
jax: 0.10.0
libtpu: 0.0.40
codegen_flags: <defaults>
</compile_context>

<pallas_src>
import jax
import jax.numpy as jnp
from jax.experimental import pallas as pl
from jax.experimental.pallas import tpu as pltpu


IN_FEATURES = 3
HIDDEN1, HIDDEN2, HIDDEN3 = 128, 64, 32
OUT_FEATURES = 2
W4_PAD = 128  # layer-4 weight lane-padded for the MXU; output itself is NOT padded


def mlp_kernel(x_ref, w1_ref, b1_ref, w2_ref, b2_ref, w3_ref, b3_ref,
               w4_ref, b4_ref, o_ref):
    x = x_ref[...]            # (TB, 3)   f32
    w1 = w1_ref[...]          # (3, 128)  f32

    # Layer 1: Linear(3, 128) + ReLU.  K=3 contraction as three VPU
    # broadcast-FMAs (an MXU push would use only 3/128 of its contraction dim).
    h = (x[:, 0:1] * w1[0:1, :]
         + x[:, 1:2] * w1[1:2, :]
         + x[:, 2:3] * w1[2:3, :])
    h = jnp.maximum(h + b1_ref[...], 0.0)
    # Dropout(0.2) -> identity at inference time.

    # Layer 2: Linear(128, 64) + ReLU  (bf16 MXU inputs, f32 accumulate/epilogue).
    h = jnp.dot(h.astype(jnp.bfloat16), w2_ref[...],
                preferred_element_type=jnp.float32)
    h = jnp.maximum(h + b2_ref[...], 0.0)
    # Dropout(0.2) -> identity at inference time.

    # Layer 3: Linear(64, 32) + ReLU.
    h = jnp.dot(h.astype(jnp.bfloat16), w3_ref[...],
                preferred_element_type=jnp.float32)
    h = jnp.maximum(h + b3_ref[...], 0.0)

    # Layer 4: Linear(32, 2).  Weights/bias are lane-padded to 128 columns so the
    # MXU dot and bias add stay lane-dense; only the 2 real columns are stored.
    # The masked (TB, 2) store costs a few cycles per tile, vs. ~126 KiB/tile of
    # HBM writeback saved by not padding the output.
    out = jnp.dot(h.astype(jnp.bfloat16), w4_ref[...],
                  preferred_element_type=jnp.float32) + b4_ref[...]
    o_ref[...] = out[:, :OUT_FEATURES].astype(o_ref.dtype)


def _round_up(n, m):
    return ((n + m - 1) // m) * m


def _default_tile(batch):
    """Batch tile: big (<=2048) to amortize per-step overhead, >=2 grid steps
    when possible (v7x megacore), never over-pads tiny batches, multiple of 8."""
    tb = min(2048, _round_up(pl.cdiv(batch, 2), 256))
    tb = min(tb, _round_up(batch, 8))
    return max(tb, 8)


def deep_nn_forward(x, kparams, *, tb=None):
    """x: (B, 3) float32, kparams: kernel-layout params. Returns (B, 2) f32."""
    B = x.shape[0]
    if tb is None:
        tb = _default_tile(B)
    tb = max(8, _round_up(int(tb), 8))
    grid_b = pl.cdiv(B, tb)
    b_pad = grid_b * tb
    if b_pad != B:
        x = jnp.pad(x, ((0, b_pad - B), (0, 0)))

    args = (
        x,
        kparams["w1"], kparams["b1"],
        kparams["w2"], kparams["b2"],
        kparams["w3"], kparams["b3"],
        kparams["w4"], kparams["b4"],
    )

    # Weights/biases: full-array blocks, constant index_map, single-buffered ->
    # one resident VMEM copy for the whole grid (no second buffer, no revisits).
    def const(shape):
        return pl.BlockSpec(shape, lambda i: (0, 0), pipeline_mode=pl.Buffered(1))

    in_specs = [
        pl.BlockSpec((tb, IN_FEATURES), lambda i: (i, 0)),     # x tile
        const((IN_FEATURES, HIDDEN1)), const((1, HIDDEN1)),    # w1, b1
        const((HIDDEN1, HIDDEN2)),     const((1, HIDDEN2)),    # w2, b2
        const((HIDDEN2, HIDDEN3)),     const((1, HIDDEN3)),    # w3, b3
        const((HIDDEN3, W4_PAD)),      const((1, W4_PAD)),     # w4, b4 (lane-padded)
    ]
    # Unpadded output: last dim (2) equals the full array dim -> legal BlockSpec.
    out_specs = pl.BlockSpec((tb, OUT_FEATURES), lambda i: (i, 0))

    flops = 2 * b_pad * (IN_FEATURES * HIDDEN1 + HIDDEN1 * HIDDEN2
                         + HIDDEN2 * HIDDEN3 + HIDDEN3 * OUT_FEATURES)
    weight_bytes = sum(int(v.size * v.dtype.itemsize) for v in args[1:])
    bytes_accessed = (b_pad * IN_FEATURES * 4          # x read
                      + b_pad * OUT_FEATURES * 4       # unpadded output write
                      + weight_bytes)

    out = pl.pallas_call(
        mlp_kernel,
        out_shape=jax.ShapeDtypeStruct((b_pad, OUT_FEATURES), jnp.float32),
        grid=(grid_b,),
        in_specs=in_specs,
        out_specs=out_specs,
        compiler_params=pltpu.CompilerParams(
            dimension_semantics=("parallel",),
            vmem_limit_bytes=32 * 1024 * 1024,
        ),
        cost_estimate=pl.CostEstimate(
            flops=flops, transcendentals=0, bytes_accessed=bytes_accessed),
    )(*args)

    return out[:B] if b_pad != B else out


def init_params(key):
    """Deterministic init matching the PyTorch layer shapes.

    PyTorch nn.Linear stores weight as (out, in); we store the transposed
    (in, out) layout so the kernel can do x @ w directly.
    """
    dims = [(IN_FEATURES, HIDDEN1), (HIDDEN1, HIDDEN2),
            (HIDDEN2, HIDDEN3), (HIDDEN3, OUT_FEATURES)]
    params = {}
    for idx, (fan_in, fan_out) in enumerate(dims, start=1):
        key, wk, bk = jax.random.split(key, 3)
        bound = 1.0 / jnp.sqrt(float(fan_in))  # torch default init scale
        params[f"w{idx}"] = jax.random.uniform(
            wk, (fan_in, fan_out), jnp.float32, -bound, bound)
        params[f"b{idx}"] = jax.random.uniform(
            bk, (1, fan_out), jnp.float32, -bound, bound)
    return params


def prepare_params(params):
    """Kernel layout: w1/b1 f32 (VPU path), w2/w3/w4 bf16 (MXU), biases f32,
    layer-4 weight/bias zero-padded 2 -> 128 columns (lane-dense MXU/add only;
    the kernel output itself is unpadded)."""
    kp = {
        "w1": params["w1"], "b1": params["b1"],
        "w2": params["w2"].astype(jnp.bfloat16), "b2": params["b2"],
        "w3": params["w3"].astype(jnp.bfloat16), "b3": params["b3"],
    }
    w4 = jnp.zeros((HIDDEN3, W4_PAD), jnp.float32).at[:, :OUT_FEATURES].set(params["w4"])
    b4 = jnp.zeros((1, W4_PAD), jnp.float32).at[:, :OUT_FEATURES].set(params["b4"])
    kp["w4"] = w4.astype(jnp.bfloat16)
    kp["b4"] = b4
    return kp


def reference_forward(x, params):
    """Pure-JAX reference with the same numerics (bf16 MXU inputs, f32 accum)."""
    h = jnp.maximum(x @ params["w1"] + params["b1"], 0.0)
    h = jnp.maximum(
        jnp.dot(h.astype(jnp.bfloat16), params["w2"].astype(jnp.bfloat16),
                preferred_element_type=jnp.float32) + params["b2"], 0.0)
    h = jnp.maximum(
        jnp.dot(h.astype(jnp.bfloat16), params["w3"].astype(jnp.bfloat16),
                preferred_element_type=jnp.float32) + params["b3"], 0.0)
    return (jnp.dot(h.astype(jnp.bfloat16), params["w4"].astype(jnp.bfloat16),
                    preferred_element_type=jnp.float32) + params["b4"])


if __name__ == "__main__":
    key = jax.random.PRNGKey(0)
    pkey, xkey = jax.random.split(key)
    params = init_params(pkey)
    kparams = prepare_params(params)

    B = 8  # small batch; feature dim 3 as implied by Linear(3, 128)
    x = jax.random.normal(xkey, (B, IN_FEATURES), jnp.float32)

    out = deep_nn_forward(x, kparams)
    out = jax.block_until_ready(out)

    ref = reference_forward(x, params)
    assert out.shape == (B, OUT_FEATURES), out.shape
    assert jnp.allclose(out, ref, atol=2e-3, rtol=2e-3), (
        f"max abs err {jnp.max(jnp.abs(out - ref))}")

    # TODO(synk): training-mode Dropout(0.2) masking is not implemented
    # (inference semantics only, matching module.eval()).
    print("KERNEL_OK")
</pallas_src>

<mosaic_0001>
module attributes {stable_mosaic.version = 11 : i64} {
  func.func @mlp_kernel(%arg0: i32, %arg1: memref<8x3xf32, #tpu.memory_space<vmem>>, %arg2: memref<3x128xf32, #tpu.memory_space<vmem>>, %arg3: memref<1x128xf32, #tpu.memory_space<vmem>>, %arg4: memref<128x64xbf16, #tpu.memory_space<vmem>>, %arg5: memref<1x64xf32, #tpu.memory_space<vmem>>, %arg6: memref<64x32xbf16, #tpu.memory_space<vmem>>, %arg7: memref<1x32xf32, #tpu.memory_space<vmem>>, %arg8: memref<32x128xbf16, #tpu.memory_space<vmem>>, %arg9: memref<1x128xf32, #tpu.memory_space<vmem>>, %arg10: memref<8x2xf32, #tpu.memory_space<vmem>>) attributes {dimension_semantics = [#tpu.dimension_semantics<parallel>], iteration_bounds = array<i64: 1>, scalar_prefetch = 0 : i64, scratch_operands = 0 : i64, tpu.core_type = #tpu.core_type<tc>, window_params = [{transform_indices = @transform_0, window_bounds = array<i64: 8, 3>}, {pipeline_mode = #tpu.pipeline_mode<synchronous>, transform_indices = @transform_1, window_bounds = array<i64: 3, 128>}, {pipeline_mode = #tpu.pipeline_mode<synchronous>, transform_indices = @transform_2, window_bounds = array<i64: 1, 128>}, {pipeline_mode = #tpu.pipeline_mode<synchronous>, transform_indices = @transform_3, window_bounds = array<i64: 128, 64>}, {pipeline_mode = #tpu.pipeline_mode<synchronous>, transform_indices = @transform_4, window_bounds = array<i64: 1, 64>}, {pipeline_mode = #tpu.pipeline_mode<synchronous>, transform_indices = @transform_5, window_bounds = array<i64: 64, 32>}, {pipeline_mode = #tpu.pipeline_mode<synchronous>, transform_indices = @transform_6, window_bounds = array<i64: 1, 32>}, {pipeline_mode = #tpu.pipeline_mode<synchronous>, transform_indices = @transform_7, window_bounds = array<i64: 32, 128>}, {pipeline_mode = #tpu.pipeline_mode<synchronous>, transform_indices = @transform_8, window_bounds = array<i64: 1, 128>}, {transform_indices = @transform_9, window_bounds = array<i64: 8, 2>}]} {
    %c0 = arith.constant 0 : index
    %c0_0 = arith.constant 0 : index
    %0 = vector.load %arg1[%c0, %c0_0] : memref<8x3xf32, #tpu.memory_space<vmem>>, vector<8x3xf32>
    %c0_1 = arith.constant 0 : index
    %c0_2 = arith.constant 0 : index
    %1 = vector.load %arg2[%c0_1, %c0_2] : memref<3x128xf32, #tpu.memory_space<vmem>>, vector<3x128xf32>
    %2 = vector.extract_strided_slice %0 {offsets = [0, 0], sizes = [8, 1], strides = [1, 1]} : vector<8x3xf32> to vector<8x1xf32>
    %3 = vector.extract_strided_slice %1 {offsets = [0, 0], sizes = [1, 128], strides = [1, 1]} : vector<3x128xf32> to vector<1x128xf32>
    %4 = vector.broadcast %2 : vector<8x1xf32> to vector<8x128xf32>
    %5 = vector.broadcast %3 : vector<1x128xf32> to vector<8x128xf32>
    %6 = arith.mulf %4, %5 : vector<8x128xf32>
    %7 = vector.extract_strided_slice %0 {offsets = [0, 1], sizes = [8, 1], strides = [1, 1]} : vector<8x3xf32> to vector<8x1xf32>
    %8 = vector.extract_strided_slice %1 {offsets = [1, 0], sizes = [1, 128], strides = [1, 1]} : vector<3x128xf32> to vector<1x128xf32>
    %9 = vector.broadcast %7 : vector<8x1xf32> to vector<8x128xf32>
    %10 = vector.broadcast %8 : vector<1x128xf32> to vector<8x128xf32>
    %11 = arith.mulf %9, %10 : vector<8x128xf32>
    %12 = arith.addf %6, %11 : vector<8x128xf32>
    %13 = vector.extract_strided_slice %0 {offsets = [0, 2], sizes = [8, 1], strides = [1, 1]} : vector<8x3xf32> to vector<8x1xf32>
    %14 = vector.extract_strided_slice %1 {offsets = [2, 0], sizes = [1, 128], strides = [1, 1]} : vector<3x128xf32> to vector<1x128xf32>
    %15 = vector.broadcast %13 : vector<8x1xf32> to vector<8x128xf32>
    %16 = vector.broadcast %14 : vector<1x128xf32> to vector<8x128xf32>
    %17 = arith.mulf %15, %16 : vector<8x128xf32>
    %18 = arith.addf %12, %17 : vector<8x128xf32>
    %c0_3 = arith.constant 0 : index
    %c0_4 = arith.constant 0 : index
    %19 = vector.load %arg3[%c0_3, %c0_4] : memref<1x128xf32, #tpu.memory_space<vmem>>, vector<1x128xf32>
    %20 = vector.broadcast %19 : vector<1x128xf32> to vector<8x128xf32>
    %21 = arith.addf %18, %20 : vector<8x128xf32>
    %cst = arith.constant 0.000000e+00 : f32
    %22 = vector.broadcast %cst : f32 to vector<8x128xf32>
    %23 = arith.maximumf %21, %22 : vector<8x128xf32>
    %24 = arith.truncf %23 : vector<8x128xf32> to vector<8x128xbf16>
    %c0_5 = arith.constant 0 : index
    %c0_6 = arith.constant 0 : index
    %25 = vector.load %arg4[%c0_5, %c0_6] : memref<128x64xbf16, #tpu.memory_space<vmem>>, vector<128x64xbf16>
    %cst_7 = arith.constant dense<0.000000e+00> : vector<8x64xf32>
    %26 = tpu.matmul %24, %25, %cst_7 {dimension_numbers = #tpu.dot_dimension_numbers<[1], [0], [0], [1], [0, 0, 1, 1], [], []>} : vector<8x128xbf16>, vector<128x64xbf16>, vector<8x64xf32> -> vector<8x64xf32>
    %c0_8 = arith.constant 0 : index
    %c0_9 = arith.constant 0 : index
    %27 = vector.load %arg5[%c0_8, %c0_9] : memref<1x64xf32, #tpu.memory_space<vmem>>, vector<1x64xf32>
    %28 = vector.broadcast %27 : vector<1x64xf32> to vector<8x64xf32>
    %29 = arith.addf %26, %28 : vector<8x64xf32>
    %cst_10 = arith.constant 0.000000e+00 : f32
    %30 = vector.broadcast %cst_10 : f32 to vector<8x64xf32>
    %31 = arith.maximumf %29, %30 : vector<8x64xf32>
    %32 = arith.truncf %31 : vector<8x64xf32> to vector<8x64xbf16>
    %c0_11 = arith.constant 0 : index
    %c0_12 = arith.constant 0 : index
    %33 = vector.load %arg6[%c0_11, %c0_12] : memref<64x32xbf16, #tpu.memory_space<vmem>>, vector<64x32xbf16>
    %cst_13 = arith.constant dense<0.000000e+00> : vector<8x32xf32>
    %34 = tpu.matmul %32, %33, %cst_13 {dimension_numbers = #tpu.dot_dimension_numbers<[1], [0], [0], [1], [0, 0, 1, 1], [], []>} : vector<8x64xbf16>, vector<64x32xbf16>, vector<8x32xf32> -> vector<8x32xf32>
    %c0_14 = arith.constant 0 : index
    %c0_15 = arith.constant 0 : index
    %35 = vector.load %arg7[%c0_14, %c0_15] : memref<1x32xf32, #tpu.memory_space<vmem>>, vector<1x32xf32>
    %36 = vector.broadcast %35 : vector<1x32xf32> to vector<8x32xf32>
    %37 = arith.addf %34, %36 : vector<8x32xf32>
    %cst_16 = arith.constant 0.000000e+00 : f32
    %38 = vector.broadcast %cst_16 : f32 to vector<8x32xf32>
    %39 = arith.maximumf %37, %38 : vector<8x32xf32>
    %40 = arith.truncf %39 : vector<8x32xf32> to vector<8x32xbf16>
    %c0_17 = arith.constant 0 : index
    %c0_18 = arith.constant 0 : index
    %41 = vector.load %arg8[%c0_17, %c0_18] : memref<32x128xbf16, #tpu.memory_space<vmem>>, vector<32x128xbf16>
    %cst_19 = arith.constant dense<0.000000e+00> : vector<8x128xf32>
    %42 = tpu.matmul %40, %41, %cst_19 {dimension_numbers = #tpu.dot_dimension_numbers<[1], [0], [0], [1], [0, 0, 1, 1], [], []>} : vector<8x32xbf16>, vector<32x128xbf16>, vector<8x128xf32> -> vector<8x128xf32>
    %c0_20 = arith.constant 0 : index
    %c0_21 = arith.constant 0 : index
    %43 = vector.load %arg9[%c0_20, %c0_21] : memref<1x128xf32, #tpu.memory_space<vmem>>, vector<1x128xf32>
    %44 = vector.broadcast %43 : vector<1x128xf32> to vector<8x128xf32>
    %45 = arith.addf %42, %44 : vector<8x128xf32>
    %46 = vector.extract_strided_slice %45 {offsets = [0, 0], sizes = [8, 2], strides = [1, 1]} : vector<8x128xf32> to vector<8x2xf32>
    %c0_22 = arith.constant 0 : index
    %c0_23 = arith.constant 0 : index
    %47 = vector.load %arg10[%c0_22, %c0_23] : memref<8x2xf32, #tpu.memory_space<vmem>>, vector<8x2xf32>
    tpu.vector_store %arg10[%c0_22, %c0_23], %46 {strides = array<i32>} : memref<8x2xf32, #tpu.memory_space<vmem>>, vector<8x2xf32>,
    return
  }
  func.func @transform_0(%arg0: i32) -> (i32, i32) {
    %c0_i32 = arith.constant 0 : i32
    %c0_i32_0 = arith.constant 0 : i32
    return %arg0, %c0_i32 : i32, i32
  }
  func.func @transform_1(%arg0: i32) -> (i32, i32) {
    %c0_i32 = arith.constant 0 : i32
    %c0_i32_0 = arith.constant 0 : i32
    %c0_i32_1 = arith.constant 0 : i32
    return %c0_i32, %c0_i32_0 : i32, i32
  }
  func.func @transform_2(%arg0: i32) -> (i32, i32) {
    %c0_i32 = arith.constant 0 : i32
    %c0_i32_0 = arith.constant 0 : i32
    %c0_i32_1 = arith.constant 0 : i32
    return %c0_i32, %c0_i32_0 : i32, i32
  }
  func.func @transform_3(%arg0: i32) -> (i32, i32) {
    %c0_i32 = arith.constant 0 : i32
    %c0_i32_0 = arith.constant 0 : i32
    %c0_i32_1 = arith.constant 0 : i32
    return %c0_i32, %c0_i32_0 : i32, i32
  }
  func.func @transform_4(%arg0: i32) -> (i32, i32) {
    %c0_i32 = arith.constant 0 : i32
    %c0_i32_0 = arith.constant 0 : i32
    %c0_i32_1 = arith.constant 0 : i32
    return %c0_i32, %c0_i32_0 : i32, i32
  }
  func.func @transform_5(%arg0: i32) -> (i32, i32) {
    %c0_i32 = arith.constant 0 : i32
    %c0_i32_0 = arith.constant 0 : i32
    %c0_i32_1 = arith.constant 0 : i32
    return %c0_i32, %c0_i32_0 : i32, i32
  }
  func.func @transform_6(%arg0: i32) -> (i32, i32) {
    %c0_i32 = arith.constant 0 : i32
    %c0_i32_0 = arith.constant 0 : i32
    %c0_i32_1 = arith.constant 0 : i32
    return %c0_i32, %c0_i32_0 : i32, i32
  }
  func.func @transform_7(%arg0: i32) -> (i32, i32) {
    %c0_i32 = arith.constant 0 : i32
    %c0_i32_0 = arith.constant 0 : i32
    %c0_i32_1 = arith.constant 0 : i32
    return %c0_i32, %c0_i32_0 : i32, i32
  }
  func.func @transform_8(%arg0: i32) -> (i32, i32) {
    %c0_i32 = arith.constant 0 : i32
    %c0_i32_0 = arith.constant 0 : i32
    %c0_i32_1 = arith.constant 0 : i32
    return %c0_i32, %c0_i32_0 : i32, i32
  }
  func.func @transform_9(%arg0: i32) -> (i32, i32) {
    %c0_i32 = arith.constant 0 : i32
    %c0_i32_0 = arith.constant 0 : i32
    return %arg0, %c0_i32 : i32, i32
  }
}

</mosaic_0001>

<llo_original>
// kernel: tpu_custom_call.1
$region0: #{tpu_custom_call.1}
  #allocation0 [shape = 'u32[]', space=smem, size = 0x4, offset = 0x4, fixed_abs, tag = 'smem constant byte address 0x4 - core index']
  #allocation1 [shape = 'u32[144,128]{1,0:T(1,128)}', space=vmem, size = 0x12000, scoped, tag = 'internal scratch']
  %s0 = inlined_call_operand.vmem [shape: f32[8,3], index: 0, kind: input, shape index: {}]
  %s1 = inlined_call_operand.vmem [shape: f32[3,128], index: 1, kind: input, shape index: {}]
  %s2 = inlined_call_operand.vmem [shape: f32[1,128], index: 2, kind: input, shape index: {}]
  %s3 = inlined_call_operand.vmem [shape: bf16[128,64], index: 3, kind: input, shape index: {}]
  %s4 = inlined_call_operand.vmem [shape: f32[1,64], index: 4, kind: input, shape index: {}]
  %s5 = inlined_call_operand.vmem [shape: bf16[64,32], index: 5, kind: input, shape index: {}]
  %s6 = inlined_call_operand.vmem [shape: f32[1,32], index: 6, kind: input, shape index: {}]
  %s7 = inlined_call_operand.vmem [shape: bf16[32,128], index: 7, kind: input, shape index: {}]
  %s8 = inlined_call_operand.vmem [shape: f32[1,128], index: 8, kind: input, shape index: {}]
  %s9 = inlined_call_operand.vmem [shape: f32[8,2], index: 9, kind: output, shape index: {}]
  %s10 = sld [smem:[#allocation0]]
  $region46: #{tpu_custom_call.1} parent=0
    _
  %s12 = ssub.s32 1, %s10
  %s13 = scalar_select 0, %s12, %s10
  // Predicated region
  $region2: #{tpu_custom_call.1} parent=0 // pred_check
    _
  $region3: #{tpu_custom_call.1} parent=0 // pred_check_branch
    %15 = sbr.rel (0) target = $region5
  $region4: #{tpu_custom_call.1} parent=0 // pred_region
    _
  $region5: #{tpu_custom_call.1} parent=0 // pred_fallthru
    _
  // Predicated region
  $region6: #{tpu_custom_call.1} parent=0 // pred_check
    _
  $region7: #{tpu_custom_call.1} parent=0 // pred_check_branch
    %17 = sbr.rel (0) target = $region9
  $region8: #{tpu_custom_call.1} parent=0 // pred_region
    _
  $region9: #{tpu_custom_call.1} parent=0 // pred_fallthru
    _
  // Predicated region
  $region10: #{tpu_custom_call.1} parent=0 // pred_check
    _
  $region11: #{tpu_custom_call.1} parent=0 // pred_check_branch
    %19 = sbr.rel (0) target = $region13
  $region12: #{tpu_custom_call.1} parent=0 // pred_region
    _
  $region13: #{tpu_custom_call.1} parent=0 // pred_fallthru
    _
  // Predicated region
  $region14: #{tpu_custom_call.1} parent=0 // pred_check
    _
  $region15: #{tpu_custom_call.1} parent=0 // pred_check_branch
    %21 = sbr.rel (0) target = $region17
  $region16: #{tpu_custom_call.1} parent=0 // pred_region
    _
  $region17: #{tpu_custom_call.1} parent=0 // pred_fallthru
    _
  // Predicated region
  $region18: #{tpu_custom_call.1} parent=0 // pred_check
    _
  $region19: #{tpu_custom_call.1} parent=0 // pred_check_branch
    %23 = sbr.rel (0) target = $region21
  $region20: #{tpu_custom_call.1} parent=0 // pred_region
    _
  $region21: #{tpu_custom_call.1} parent=0 // pred_fallthru
    _
  // Predicated region
  $region22: #{tpu_custom_call.1} parent=0 // pred_check
    _
  $region23: #{tpu_custom_call.1} parent=0 // pred_check_branch
    %25 = sbr.rel (0) target = $region25
  $region24: #{tpu_custom_call.1} parent=0 // pred_region
    _
  $region25: #{tpu_custom_call.1} parent=0 // pred_fallthru
    _
  // Predicated region
  $region26: #{tpu_custom_call.1} parent=0 // pred_check
    _
  $region27: #{tpu_custom_call.1} parent=0 // pred_check_branch
    %27 = sbr.rel (0) target = $region29
  $region28: #{tpu_custom_call.1} parent=0 // pred_region
    _
  $region29: #{tpu_custom_call.1} parent=0 // pred_fallthru
    _
  // Predicated region
  $region30: #{tpu_custom_call.1} parent=0 // pred_check
    _
  $region31: #{tpu_custom_call.1} parent=0 // pred_check_branch
    %29 = sbr.rel (0) target = $region33
  $region32: #{tpu_custom_call.1} parent=0 // pred_region
    _
  $region33: #{tpu_custom_call.1} parent=0 // pred_fallthru
    _
  // Predicated region
  $region34: #{tpu_custom_call.1} parent=0 // pred_check
    _
  $region35: #{tpu_custom_call.1} parent=0 // pred_check_branch
    %31 = sbr.rel (0) target = $region37
  $region36: #{tpu_custom_call.1} parent=0 // pred_region
    _
  $region37: #{tpu_custom_call.1} parent=0 // pred_fallthru
    _
  %v33 = vld [vmem:[%s0] sm:$0xff]
  %v34 = vld [vmem:[%s1] sm:$0x7]
  %36 = vset.pattern.permute.xlu0 0
  %37 = vperm.xlu0 %36, %v33
  %v38 = vpop.permute.xlu0 %37
  %v40 = vlaneseq
  %v41 = vshrl.u32 %v40, 7
  %v42 = vsub.s32 0, %v41
  %v43 = vrot.slane %v34, %v42
  %v44 = vmul.f32 %v38, %v43
  %45 = vset.pattern.permute.xlu0 1
  %46 = vperm.xlu0 %45, %v33
  %v47 = vpop.permute.xlu0 %46
  %v49 = vlaneseq
  %v50 = vshrl.u32 %v49, 7
  %v51 = vsub.s32 1, %v50
  %v52 = vrot.slane %v34, %v51
  %v53 = vmul.f32 %v47, %v52
  %v54 = vadd.f32 %v44, %v53
  %55 = vset.pattern.permute.xlu0 2
  %56 = vperm.xlu0 %55, %v33
  %v57 = vpop.permute.xlu0 %56
  %v59 = vlaneseq
  %v60 = vshrl.u32 %v59, 7
  %v61 = vsub.s32 2, %v60
  %v62 = vrot.slane %v34, %v61
  %v63 = vmul.f32 %v57, %v62
  %v64 = vadd.f32 %v54, %v63
  %v65 = vld [vmem:[%s2] sm:$0x1]
  %v67 = vlaneseq
  %v68 = vshrl.u32 %v67, 7
  %v69 = vsub.s32 0, %v68
  %v70 = vrot.slane %v65, %v69
  %v72 = vadd.f32 %v64, %v70
  %v73 = vmax.f32 %v72, 0.0
  %v74 = vpack.c.bf16 %v73, %v73
  %v75 = vld [vmem:[%s3] sm:$0xf]
  %v76 = vld [vmem:[%s3 + $0x4] sm:$0xf]
  %v77 = vld [vmem:[%s3 + $0x8] sm:$0xf]
  %v78 = vld [vmem:[%s3 + $0xc] sm:$0xf]
  %v79 = vld [vmem:[%s3 + $0x10] sm:$0xf]
  %v80 = vld [vmem:[%s3 + $0x14] sm:$0xf]
  %v81 = vld [vmem:[%s3 + $0x18] sm:$0xf]
  %v82 = vld [vmem:[%s3 + $0x1c] sm:$0xf]
  %v83 = vld [vmem:[%s3 + $0x20] sm:$0xf]
  %v84 = vld [vmem:[%s3 + $0x24] sm:$0xf]
  %v85 = vld [vmem:[%s3 + $0x28] sm:$0xf]
  %v86 = vld [vmem:[%s3 + $0x2c] sm:$0xf]
  %v87 = vld [vmem:[%s3 + $0x30] sm:$0xf]
  %v88 = vld [vmem:[%s3 + $0x34] sm:$0xf]
  %v89 = vld [vmem:[%s3 + $0x38] sm:$0xf]
  %v90 = vld [vmem:[%s3 + $0x3c] sm:$0xf]
  %v91 = vld [vmem:[%s4] sm:$0x1]
  %v93 = vlaneseq
  %v94 = vshrl.u32 %v93, 7
  %v95 = vsub.s32 0, %v94
  %v96 = vrot.slane %v91, %v95
  %v114 = vunpack.c.l.b16 %v75
  %v115 = vunpack.c.l.b16 %v76
  %v116 = vunpack.c.l.b16 %v77
  %v117 = vunpack.c.l.b16 %v78
  %v118 = vunpack.c.l.b16 %v79
  %v119 = vunpack.c.l.b16 %v80
  %v120 = vunpack.c.l.b16 %v81
  %v121 = vunpack.c.l.b16 %v82
  %v122 = vunpack.c.l.b16 %v83
  %v123 = vunpack.c.l.b16 %v84
  %v124 = vunpack.c.l.b16 %v85
  %v125 = vunpack.c.l.b16 %v86
  %v126 = vunpack.c.l.b16 %v87
  %v127 = vunpack.c.l.b16 %v88
  %v128 = vunpack.c.l.b16 %v89
  %v129 = vunpack.c.l.b16 %v90
  %v130 = vpack.c.b16 %v115, %v114
  %v131 = vpack.c.b16 %v117, %v116
  %v132 = vpack.c.b16 %v119, %v118
  %v133 = vpack.c.b16 %v121, %v120
  %v134 = vpack.c.b16 %v123, %v122
  %v135 = vpack.c.b16 %v125, %v124
  %v136 = vpack.c.b16 %v127, %v126
  %v137 = vpack.c.b16 %v129, %v128
  %146 = vmatprep.subr.bf16.mxu0 0
  %147 = vmatpush1.bf16.msra.mxu0 %v130
  %148 = vmatprep.subr.bf16.mxu0 0
  %149 = vmatpush1.bf16.msra.mxu0 %v131
  %150 = vmatprep.subr.bf16.mxu0 0
  %151 = vmatpush1.bf16.msra.mxu0 %v132
  %152 = vmatprep.subr.bf16.mxu0 0
  %153 = vmatpush1.bf16.msra.mxu0 %v133
  %154 = vmatprep.subr.bf16.mxu0 0
  %155 = vmatpush1.bf16.msra.mxu0 %v134
  %156 = vmatprep.subr.bf16.mxu0 0
  %157 = vmatpush1.bf16.msra.mxu0 %v135
  %158 = vmatprep.subr.bf16.mxu0 0
  %159 = vmatpush1.bf16.msra.mxu0 %v136
  %160 = vmatprep.subr.bf16.mxu0 0
  %161 = vmatpush1.bf16.msra.mxu0 %v137
  %162 = vmatprep.subr.bf16.mxu0 0
  %163 = vmatpush1.bf16.msra.mxu0 0
  %164 = vmatprep.subr.bf16.mxu0 0
  %165 = vmatpush1.bf16.msra.mxu0 0
  %166 = vmatprep.subr.bf16.mxu0 0
  %167 = vmatpush1.bf16.msra.mxu0 0
  %168 = vmatprep.subr.bf16.mxu0 0
  %169 = vmatpush1.bf16.msra.mxu0 0
  %170 = vmatprep.subr.bf16.mxu0 0
  %171 = vmatpush1.bf16.msra.mxu0 0
  %172 = vmatprep.subr.bf16.mxu0 0
  %173 = vmatpush1.bf16.msra.mxu0 0
  %174 = vmatprep.subr.bf16.mxu0 0
  %175 = vmatpush1.bf16.msra.mxu0 0
  %176 = vmatprep.subr.bf16.mxu0 0
  %177 = vmatpush1.bf16.msra.mxu0 0
  %178 = vmatprep.mubr.bf16.mxu0 0
  %179 = vmatmul.mubr.bf16.gmra.mrb[0].mxu0 %v74
  %v180 = vpop.f32.mrb[0].mxu0
  %v181 = vadd.f32 %v96, %v180
  %v182 = vpop.f32.mrb[0].mxu0
  %v183 = vpop.f32.mrb[0].mxu0
  %v184 = vpop.f32.mrb[0].mxu0
  %185 = vdwg.mxu0
  %v186 = vmax.f32 %v181, 0.0
  %v187 = vpack.c.bf16 %v186, %v186
  %v188 = vld [vmem:[%s5] sm:$0xf]
  %v189 = vld [vmem:[%s5 + $0x4] sm:$0xf]
  %v190 = vld [vmem:[%s5 + $0x8] sm:$0xf]
  %v191 = vld [vmem:[%s5 + $0xc] sm:$0xf]
  %v192 = vld [vmem:[%s5 + $0x10] sm:$0xf]
  %v193 = vld [vmem:[%s5 + $0x14] sm:$0xf]
  %v194 = vld [vmem:[%s5 + $0x18] sm:$0xf]
  %v195 = vld [vmem:[%s5 + $0x1c] sm:$0xf]
  %v196 = vld [vmem:[%s6] sm:$0x1]
  %v198 = vlaneseq
  %v199 = vshrl.u32 %v198, 7
  %v200 = vsub.s32 0, %v199
  %v201 = vrot.slane %v196, %v200
  %v211 = vunpack.c.l.b16 %v188
  %v212 = vunpack.c.l.b16 %v189
  %v213 = vunpack.c.l.b16 %v190
  %v214 = vunpack.c.l.b16 %v191
  %v215 = vunpack.c.l.b16 %v192
  %v216 = vunpack.c.l.b16 %v193
  %v217 = vunpack.c.l.b16 %v194
  %v218 = vunpack.c.l.b16 %v195
  %v219 = vpack.c.b16 %v212, %v211
  %v220 = vpack.c.b16 %v214, %v213
  %v221 = vpack.c.b16 %v216, %v215
  %v222 = vpack.c.b16 %v218, %v217
  %vm227 = vcmask 523264
  %v229 = vsel %vm227, %v187, 0
  %231 = vmatprep.subr.bf16.mxu0 0
  %232 = vmatpush1.bf16.msra.mxu0 %v219
  %233 = vmatprep.subr.bf16.mxu0 0
  %234 = vmatpush1.bf16.msra.mxu0 %v220
  %235 = vmatprep.subr.bf16.mxu0 0
  %236 = vmatpush1.bf16.msra.mxu0 %v221
  %237 = vmatprep.subr.bf16.mxu0 0
  %238 = vmatpush1.bf16.msra.mxu0 %v222
  %239 = vmatprep.subr.bf16.mxu0 0
  %240 = vmatpush1.bf16.msra.mxu0 0
  %241 = vmatprep.subr.bf16.mxu0 0
  %242 = vmatpush1.bf16.msra.mxu0 0
  %243 = vmatprep.subr.bf16.mxu0 0
  %244 = vmatpush1.bf16.msra.mxu0 0
  %245 = vmatprep.subr.bf16.mxu0 0
  %246 = vmatpush1.bf16.msra.mxu0 0
  %247 = vmatprep.subr.bf16.mxu0 0
  %248 = vmatpush1.bf16.msra.mxu0 0
  %249 = vmatprep.subr.bf16.mxu0 0
  %250 = vmatpush1.bf16.msra.mxu0 0
  %251 = vmatprep.subr.bf16.mxu0 0
  %252 = vmatpush1.bf16.msra.mxu0 0
  %253 = vmatprep.subr.bf16.mxu0 0
  %254 = vmatpush1.bf16.msra.mxu0 0
  %255 = vmatprep.subr.bf16.mxu0 0
  %256 = vmatpush1.bf16.msra.mxu0 0
  %257 = vmatprep.subr.bf16.mxu0 0
  %258 = vmatpush1.bf16.msra.mxu0 0
  %259 = vmatprep.subr.bf16.mxu0 0
  %260 = vmatpush1.bf16.msra.mxu0 0
  %261 = vmatprep.subr.bf16.mxu0 0
  %262 = vmatpush1.bf16.msra.mxu0 0
  %263 = vmatprep.mubr.bf16.mxu0 0
  %264 = vmatmul.mubr.bf16.gmra.mrb[0].mxu0 %v229
  %v265 = vpop.f32.mrb[0].mxu0
  %v266 = vadd.f32 %v201, %v265
  %v267 = vpop.f32.mrb[0].mxu0
  %v268 = vpop.f32.mrb[0].mxu0
  %v269 = vpop.f32.mrb[0].mxu0
  %270 = vdwg.mxu0
  %v271 = vmax.f32 %v266, 0.0
  %v272 = vpack.c.bf16 %v271, %v271
  %v273 = vld [vmem:[%s7] sm:$0xf]
  %v274 = vld [vmem:[%s7 + $0x4] sm:$0xf]
  %v275 = vld [vmem:[%s7 + $0x8] sm:$0xf]
  %v276 = vld [vmem:[%s7 + $0xc] sm:$0xf]
  %v277 = vld [vmem:[%s8] sm:$0x1]
  %v279 = vlaneseq
  %v280 = vshrl.u32 %v279, 7
  %v281 = vsub.s32 0, %v280
  %v282 = vrot.slane %v277, %v281
  %v288 = vunpack.c.l.b16 %v273
  %v289 = vunpack.c.l.b16 %v274
  %v290 = vunpack.c.l.b16 %v275
  %v291 = vunpack.c.l.b16 %v276
  %v292 = vpack.c.b16 %v289, %v288
  %v293 = vpack.c.b16 %v291, %v290
  %vm296 = vcmask 261120
  %v298 = vsel %vm296, %v272, 0
  %300 = vmatprep.subr.bf16.mxu0 0
  %301 = vmatpush1.bf16.msra.mxu0 %v292
  %302 = vmatprep.subr.bf16.mxu0 0
  %303 = vmatpush1.bf16.msra.mxu0 %v293
  %304 = vmatprep.subr.bf16.mxu0 0
  %305 = vmatpush1.bf16.msra.mxu0 0
  %306 = vmatprep.subr.bf16.mxu0 0
  %307 = vmatpush1.bf16.msra.mxu0 0
  %308 = vmatprep.subr.bf16.mxu0 0
  %309 = vmatpush1.bf16.msra.mxu0 0
  %310 = vmatprep.subr.bf16.mxu0 0
  %311 = vmatpush1.bf16.msra.mxu0 0
  %312 = vmatprep.subr.bf16.mxu0 0
  %313 = vmatpush1.bf16.msra.mxu0 0
  %314 = vmatprep.subr.bf16.mxu0 0
  %315 = vmatpush1.bf16.msra.mxu0 0
  %316 = vmatprep.subr.bf16.mxu0 0
  %317 = vmatpush1.bf16.msra.mxu0 0
  %318 = vmatprep.subr.bf16.mxu0 0
  %319 = vmatpush1.bf16.msra.mxu0 0
  %320 = vmatprep.subr.bf16.mxu0 0
  %321 = vmatpush1.bf16.msra.mxu0 0
  %322 = vmatprep.subr.bf16.mxu0 0
  %323 = vmatpush1.bf16.msra.mxu0 0
  %324 = vmatprep.subr.bf16.mxu0 0
  %325 = vmatpush1.bf16.msra.mxu0 0
  %326 = vmatprep.subr.bf16.mxu0 0
  %327 = vmatpush1.bf16.msra.mxu0 0
  %328 = vmatprep.subr.bf16.mxu0 0
  %329 = vmatpush1.bf16.msra.mxu0 0
  %330 = vmatprep.subr.bf16.mxu0 0
  %331 = vmatpush1.bf16.msra.mxu0 0
  %332 = vmatprep.mubr.bf16.mxu0 0
  %333 = vmatmul.mubr.bf16.gmra.mrb[0].mxu0 %v298
  %v334 = vpop.f32.mrb[0].mxu0
  %v335 = vadd.f32 %v282, %v334
  %v336 = vpop.f32.mrb[0].mxu0
  %v337 = vpop.f32.mrb[0].mxu0
  %v338 = vpop.f32.mrb[0].mxu0
  %339 = vdwg.mxu0
  %vm340 = vcmask 15360
  %341 = vst.msk [vmem:[%s9] sm:$0xff] %vm340, %v335
  // Predicated region
  $region38: #{tpu_custom_call.1} parent=0 // pred_check
    _
  $region39: #{tpu_custom_call.1} parent=0 // pred_check_branch
    %343 = sbr.rel (0) target = $region41
  $region40: #{tpu_custom_call.1} parent=0 // pred_region
    _
  $region41: #{tpu_custom_call.1} parent=0 // pred_fallthru
    _
  // Predicated region
  $region42: #{tpu_custom_call.1} parent=0 // pred_check
    _
  $region43: #{tpu_custom_call.1} parent=0 // pred_check_branch
    %345 = sbr.rel (0) target = $region45
  $region44: #{tpu_custom_call.1} parent=0 // pred_region
    _
  $region45: #{tpu_custom_call.1} parent=0 // pred_fallthru
    _

</llo_original>
